<compile_context>
chip_gen: v6e
topology: v6e:2x2x1
jax: 0.10.0
libtpu: 0.0.40
codegen_flags: <defaults>
</compile_context>

<pallas_src>
import math

import jax
import jax.numpy as jnp
from jax.experimental import pallas as pl
from jax.experimental.pallas import tpu as pltpu

_LANE_CANDIDATES = (512, 256, 128)   # lane-dense last dims (multiples of 128)
_MIN_GRID_BLOCKS = 8                 # keep DMA pipeline busy + feed both v7x TCs
_SMALL_ARRAY_BYTES = 256 * 1024      # below this, a single block is fine


def _mul_kernel(w_ref, x_ref, o_ref):
    # w_ref: (1,) float32 scalar in SMEM. Compute in f32, cast to output dtype
    # (no-op for f32 inputs; handles bf16/int promotion; VALU slack is huge in
    # a memory-bound kernel so this costs nothing).
    w = w_ref[0]
    o_ref[...] = (x_ref[...].astype(jnp.float32) * w).astype(o_ref.dtype)


def _block_bytes_for_device() -> int:
    """Per-buffer block byte budget: 2 MiB (safe on v5e's 16 MiB scoped VMEM
    with in+out double buffering), 4 MiB on v6e / v7x (16 MiB total, well under
    their 32 MiB default scoped VMEM)."""
    try:
        kind = jax.devices()[0].device_kind.lower()
    except Exception:
        kind = ""
    if ("v6" in kind) or ("v7" in kind) or ("7x" in kind):
        return 4 * 1024 * 1024
    return 2 * 1024 * 1024


def _round_up(a: int, m: int) -> int:
    return (a + m - 1) // m * m


def mul_pallas(x: jax.Array, weight) -> jax.Array:
    """Elementwise x * weight, matching torch `Mul.forward` semantics."""
    orig_shape = x.shape
    n = math.prod(orig_shape) if orig_shape else 1

    if jnp.issubdtype(x.dtype, jnp.floating):
        out_dtype = x.dtype
    else:
        # torch promotion: int_tensor * python_float -> float32, int*int -> int.
        out_dtype = jnp.result_type(x.dtype, weight)

    w_arr = jnp.asarray(weight, dtype=jnp.float32).reshape((1,))
    flat = x.reshape(-1)

    # Widest lane-dense last dim that divides n exactly -> no pad, no slice.
    lane = None
    for cand in _LANE_CANDIDATES:
        if n >= cand and n % cand == 0:
            lane = cand
            break

    padded = False
    if lane is None:
        # TODO(synk): handle the <128-element tail with an in-kernel masked
        # store instead of wrapper-side pad + slice (extra HBM round trips).
        lane = 128
        n_pad = _round_up(n, lane)
        flat = jnp.pad(flat, (0, n_pad - n))
        padded = True
    else:
        n_pad = n

    rows = n_pad // lane
    x2d = flat.reshape(rows, lane)

    itemsize = max(jnp.dtype(x.dtype).itemsize, jnp.dtype(out_dtype).itemsize)
    block_bytes = _block_bytes_for_device()
    tr_max = max(8, (block_bytes // (lane * itemsize)) // 8 * 8)
    total_bytes = rows * lane * itemsize

    if rows <= 8 or total_bytes <= _SMALL_ARRAY_BYTES:
        # Tiny tensor: single block equal to the full array (always legal).
        tr = rows
    else:
        # Force >= _MIN_GRID_BLOCKS blocks so the writeback of block i overlaps
        # the fetch of block i+1 and both v7x TensorCores get work; cap by the
        # per-generation byte budget. tr stays a multiple of 8.
        tr_for_min_grid = _round_up(pl.cdiv(rows, _MIN_GRID_BLOCKS), 8)
        tr = max(8, min(tr_max, tr_for_min_grid))

    grid = (pl.cdiv(rows, tr),)

    out2d = pl.pallas_call(
        _mul_kernel,
        out_shape=jax.ShapeDtypeStruct((rows, lane), out_dtype),
        grid_spec=pl.GridSpec(
            grid=grid,
            in_specs=[
                # Runtime scalar weight in SMEM: no recompile per weight value.
                pl.BlockSpec(memory_space=pltpu.MemorySpace.SMEM),
                pl.BlockSpec((tr, lane), lambda i: (i, 0)),
            ],
            out_specs=pl.BlockSpec((tr, lane), lambda i: (i, 0)),
        ),
        compiler_params=pltpu.CompilerParams(
            # Row blocks are independent -> shard across both TensorCores on
            # v7x; harmless no-op on single-TC v5e/v6e.
            dimension_semantics=("parallel",),
        ),
    )(w_arr, x2d)

    if padded:
        return out2d.reshape(-1)[:n].reshape(orig_shape)
    return out2d.reshape(orig_shape)


if __name__ == "__main__":
    key = jax.random.PRNGKey(0)
    weight = 0.5

    # Shape implied by the module's typical NCHW activation use.
    x = jax.random.normal(key, (2, 4, 16, 16), dtype=jnp.float32)
    y = mul_pallas(x, weight)
    jax.block_until_ready(y)
    ref = x * weight
    assert y.shape == x.shape and y.dtype == x.dtype
    assert jnp.allclose(y, ref, atol=1e-6), "mismatch vs reference"

    # Tiled, divisible path: no pad/slice, multi-block grid, ragged last block.
    x_mid = jax.random.normal(jax.random.PRNGKey(1), (20, 36, 128), dtype=jnp.float32)
    y_mid = mul_pallas(x_mid, weight)
    jax.block_until_ready(y_mid)
    assert jnp.allclose(y_mid, x_mid * weight, atol=1e-6), "mismatch (tiled path)"

    # Non-divisible tail -> minimal pad fallback path.
    x_odd = jax.random.normal(jax.random.PRNGKey(2), (3, 5, 37, 129), dtype=jnp.float32)
    y_odd = mul_pallas(x_odd, weight)
    jax.block_until_ready(y_odd)
    assert jnp.allclose(y_odd, x_odd * weight, atol=1e-6), "mismatch (padded path)"

    # bf16 path (byte-budget tiling, f32 compute then cast; *0.5 is exact).
    x_bf = jax.random.normal(jax.random.PRNGKey(3), (2, 64, 256), dtype=jnp.bfloat16)
    y_bf = mul_pallas(x_bf, weight)
    jax.block_until_ready(y_bf)
    assert y_bf.dtype == jnp.bfloat16
    assert jnp.allclose(y_bf.astype(jnp.float32),
                        (x_bf * weight).astype(jnp.float32), atol=1e-2), "mismatch (bf16)"

    print("KERNEL_OK")
</pallas_src>

<mosaic_0001>
module attributes {stable_mosaic.version = 11 : i64} {
  func.func @_mul_kernel(%arg0: i32, %arg1: memref<1xf32, #tpu.memory_space<smem>>, %arg2: memref<4x512xf32, #tpu.memory_space<vmem>>, %arg3: memref<4x512xf32, #tpu.memory_space<vmem>>) attributes {dimension_semantics = [#tpu.dimension_semantics<parallel>], iteration_bounds = array<i64: 1>, scalar_prefetch = 0 : i64, scratch_operands = 0 : i64, tpu.core_type = #tpu.core_type<tc>, window_params = [{transform_indices = @transform_0, window_bounds = array<i64: 1>}, {transform_indices = @transform_1, window_bounds = array<i64: 4, 512>}, {transform_indices = @transform_2, window_bounds = array<i64: 4, 512>}]} {
    %c0 = arith.constant 0 : index
    %0 = memref.load %arg1[%c0] : memref<1xf32, #tpu.memory_space<smem>>
    %c0_0 = arith.constant 0 : index
    %c0_1 = arith.constant 0 : index
    %1 = vector.load %arg2[%c0_0, %c0_1] : memref<4x512xf32, #tpu.memory_space<vmem>>, vector<4x512xf32>
    %2 = vector.broadcast %0 : f32 to vector<4x512xf32>
    %3 = arith.mulf %1, %2 : vector<4x512xf32>
    %c0_2 = arith.constant 0 : index
    %c0_3 = arith.constant 0 : index
    %4 = vector.load %arg3[%c0_2, %c0_3] : memref<4x512xf32, #tpu.memory_space<vmem>>, vector<4x512xf32>
    tpu.vector_store %arg3[%c0_2, %c0_3], %3 {strides = array<i32>} : memref<4x512xf32, #tpu.memory_space<vmem>>, vector<4x512xf32>,
    return
  }
  func.func @transform_0(%arg0: i32) -> i32 {
    %c0_i32 = arith.constant 0 : i32
    %c0_i32_0 = arith.constant 0 : i32
    return %c0_i32 : i32
  }
  func.func @transform_1(%arg0: i32) -> (i32, i32) {
    %c0_i32 = arith.constant 0 : i32
    %c0_i32_0 = arith.constant 0 : i32
    return %arg0, %c0_i32 : i32, i32
  }
  func.func @transform_2(%arg0: i32) -> (i32, i32) {
    %c0_i32 = arith.constant 0 : i32
    %c0_i32_0 = arith.constant 0 : i32
    return %arg0, %c0_i32 : i32, i32
  }
}

</mosaic_0001>

<llo_original>
// kernel: tpu_custom_call.1
$region0: #{tpu_custom_call.1}
  #allocation0 [shape = 'u32[]', space=smem, size = 0x4, offset = 0x4, fixed_abs, tag = 'smem constant byte address 0x4 - core index']
  #allocation1 [shape = 'u32[144,128]{1,0:T(1,128)}', space=vmem, size = 0x12000, scoped, tag = 'internal scratch']
  #allocation2 [shape = 'f32[1]{0:T(128)S(6)}', space=smem, size = 0x200, scoped, tag = 'scoped memory for tpu_custom_call.1']
  %s0 = inlined_call_operand.<no memory space> [shape: f32[1], index: 0, kind: input, shape index: {}]
  %s1 = inlined_call_operand.hbm [shape: f32[4,512], index: 1, kind: input, shape index: {}]
  %s2 = inlined_call_operand.hbm [shape: f32[4,512], index: 2, kind: output, shape index: {}]
  %s3 = sld [smem:[#allocation0]]
  $region22: #{tpu_custom_call.1} parent=0
    _
  %s5 = ssub.s32 1, %s3
  %s6 = scalar_select 0, %s5, %s3
  %7 = sst [smem:[#allocation2]] %s0
  $region1: #{tpu_custom_call.1} parent=0
    #allocation3 [shape = 'u8[8192]{0}', space=vmem, size = 0x2000, scoped, tag = 'input window, operand 1, single buffered']
    #allocation4 [shape = 's32[1]{0}', space=sflag, size = 0x4, scoped, tag = 'scoped memory for tpu_custom_call.1']
    #allocation5 [shape = 's32[1]{0}', space=sflag, size = 0x4, scoped, tag = 'scoped memory for tpu_custom_call.1']
    #allocation6 [shape = 'u8[8192]{0}', space=vmem, size = 0x2000, scoped, tag = 'output window, operand 0, single buffered']
    %8 = vsyncpa [#allocation4], 0
    %9 = vsyncpa [#allocation5], 0
    // Predicated region
    $region2: #{tpu_custom_call.1} parent=1 // pred_check
      _
    $region3: #{tpu_custom_call.1} parent=1 // pred_check_branch
      %11 = sbr.rel (0) target = $region5
    $region4: #{tpu_custom_call.1} parent=1 // pred_region
      _
    $region5: #{tpu_custom_call.1} parent=1 // pred_fallthru
      _
    // Predicated region
    $region6: #{tpu_custom_call.1} parent=1 // pred_check
      _
    $region7: #{tpu_custom_call.1} parent=1 // pred_check_branch
      %13 = sbr.rel (0) target = $region9
    $region8: #{tpu_custom_call.1} parent=1 // pred_region
      %s15 = ssub.s32 256, 256
      %16 = vsyncadd [#allocation4], %s15
      %s18 = sshll.u32 [#allocation3], 4
      %s19 = int_to_ptr.vmem [resolvable:$true] %s18
      %21 = dma.hbm_to_vmem [thread:$0]  %s1, 256, %s19, [#allocation4]
    $region9: #{tpu_custom_call.1} parent=1 // pred_fallthru
      _
    // Predicated region
    $region10: #{tpu_custom_call.1} parent=1 // pred_check
      _
    $region11: #{tpu_custom_call.1} parent=1 // pred_check_branch
      %23 = sbr.rel (0) target = $region13
    $region12: #{tpu_custom_call.1} parent=1 // pred_region
      %24 = dma.done [#allocation4], 256
    $region13: #{tpu_custom_call.1} parent=1 // pred_fallthru
      _
    %s25 = sld [smem:[#allocation2]]
    %v26 = vld [vmem:[#allocation3] sm:$0xff]
    %v27 = vld [vmem:[#allocation3 + $0x8] sm:$0xff]
    %v28 = vstv %s25
    %v29 = vmul.f32 %v26, %v28
    %v30 = vmul.f32 %v27, %v28
    %31 = vst [vmem:[#allocation6] sm:$0xff] %v29
    %32 = vst [vmem:[#allocation6 + $0x8] sm:$0xff] %v30
    // Predicated region
    $region14: #{tpu_custom_call.1} parent=1 // pred_check
      _
    $region15: #{tpu_custom_call.1} parent=1 // pred_check_branch
      %34 = sbr.rel (0) target = $region17
    $region16: #{tpu_custom_call.1} parent=1 // pred_region
      %s36 = ssub.s32 256, 256
      %37 = vsyncadd [#allocation5], %s36
      %s39 = sshll.u32 [#allocation6], 4
      %s40 = int_to_ptr.vmem [resolvable:$true] %s39
      %42 = dma.vmem_to_hbm [thread:$0]  %s40, 256, %s2, [#allocation5]
    $region17: #{tpu_custom_call.1} parent=1 // pred_fallthru
      _
    // Predicated region
    $region18: #{tpu_custom_call.1} parent=1 // pred_check
      _
    $region19: #{tpu_custom_call.1} parent=1 // pred_check_branch
      %44 = sbr.rel (0) target = $region21
    $region20: #{tpu_custom_call.1} parent=1 // pred_region
      %45 = dma.done [#allocation5], 256
    $region21: #{tpu_custom_call.1} parent=1 // pred_fallthru
      _
    %46 = vsyncpa [#allocation4], 1
    %47 = vsyncpa [#allocation5], 1

</llo_original>
